<compile_context>
chip_gen: v5e
topology: v5e:2x2
jax: 0.10.0
libtpu: 0.0.40
codegen_flags: <defaults>
</compile_context>

<pallas_src>
import math

import jax
import jax.numpy as jnp
from jax.experimental import pallas as pl
from jax.experimental.pallas import tpu as pltpu

HIDDEN_DIM = 256
HEAD_HALF = 128          # mu -> columns [0, 128), log_std -> columns [128, 256)
_MEGACORE_SPLIT = 256    # B >= this -> force >= 2 grid steps (v7x 2nd TC)


def _round_up(x, m):
    return ((x + m - 1) // m) * m


def _skill_policy_kernel(x_ref, w1_ref, b1_ref, w2_ref, b2_ref,
                         wh_ref, bh_ref, out_ref):
    # Layer 1: single dot on the pre-concatenated [state|skill] slab.
    h1 = (jnp.dot(x_ref[...], w1_ref[...], preferred_element_type=jnp.float32)
          + b1_ref[...])
    h1 = jnp.maximum(h1, 0.0).astype(jnp.bfloat16)

    # Layer 2.
    h2 = (jnp.dot(h1, w2_ref[...], preferred_element_type=jnp.float32)
          + b2_ref[...])
    h2 = jnp.maximum(h2, 0.0).astype(jnp.bfloat16)

    # Fused lane-dense heads: [:, :128] = mu, [:, 128:] = log_std (zero-padded).
    heads = (jnp.dot(h2, wh_ref[...], preferred_element_type=jnp.float32)
             + bh_ref[...])
    half = heads.shape[-1] // 2          # static, tile-aligned (128)
    out_ref[:, :half] = heads[:, :half]
    out_ref[:, half:] = jnp.exp(jnp.clip(heads[:, half:], -20.0, 2.0))


def _select_block_m(B, batch_tile):
    """Batch tile: big enough to amortize per-step overhead, >=2 steps for
    megacore once B >= 256, capped by batch_tile for VMEM safety."""
    if B < _MEGACORE_SPLIT:
        return _round_up(B, 8)
    half = _round_up(pl.cdiv(B, 2), 8)
    return min(_round_up(batch_tile, 8), half)


def skill_policy_forward(state, skill, packed, action_dim, *, batch_tile=1024):
    """SkillPolicy forward in a single fused Pallas kernel.

    state: [B, state_dim] f32, skill: [B, skill_dim] f32.
    packed: output of pack_params().  Returns (mu, std), each [B, action_dim] f32.
    """
    B = state.shape[0]
    in_dim = state.shape[1] + skill.shape[1]
    H = packed["w2"].shape[0]
    out_cols = packed["wh"].shape[1]          # 2 * HEAD_HALF

    # Concatenate + cast once in XLA (tiny [B, in_dim] bf16 slab).
    x = jnp.concatenate([state, skill], axis=-1).astype(jnp.bfloat16)

    block_m = _select_block_m(B, batch_tile)
    B_pad = _round_up(B, block_m)
    if B_pad != B:
        x = jnp.pad(x, ((0, B_pad - B), (0, 0)))
    grid = (B_pad // block_m,)

    row_map = lambda i: (i, 0)   # batch-tiled operands
    rep_map = lambda i: (0, 0)   # weights / biases: same block every step

    flops = 2 * B_pad * (in_dim * H + H * H + H * out_cols)
    bytes_accessed = (
        x.size * x.dtype.itemsize
        + B_pad * out_cols * 4
        + sum(int(v.size) * v.dtype.itemsize for v in packed.values()))
    cost = pl.CostEstimate(flops=int(flops),
                           transcendentals=int(B_pad * HEAD_HALF),
                           bytes_accessed=int(bytes_accessed))

    out = pl.pallas_call(
        _skill_policy_kernel,
        out_shape=jax.ShapeDtypeStruct((B_pad, out_cols), jnp.float32),
        grid=grid,
        in_specs=[
            pl.BlockSpec((block_m, in_dim), row_map),
            pl.BlockSpec((in_dim, H), rep_map),
            pl.BlockSpec((1, H), rep_map),
            pl.BlockSpec((H, H), rep_map),
            pl.BlockSpec((1, H), rep_map),
            pl.BlockSpec((H, out_cols), rep_map),
            pl.BlockSpec((1, out_cols), rep_map),
        ],
        out_specs=pl.BlockSpec((block_m, out_cols), row_map),
        compiler_params=pltpu.CompilerParams(
            dimension_semantics=("parallel",),
            vmem_limit_bytes=32 * 1024 * 1024),
        cost_estimate=cost,
    )(x,
      packed["w1"], packed["b1"],
      packed["w2"], packed["b2"],
      packed["wh"], packed["bh"])

    mu = out[:B, :action_dim]
    std = out[:B, HEAD_HALF:HEAD_HALF + action_dim]
    return mu, std


def init_params(key, state_dim, skill_dim, action_dim):
    """f32 master parameters, mimicking nn.Linear default init (U[±1/sqrt(fan_in)])."""
    in_dim = state_dim + skill_dim

    def linear(k, fan_in, fan_out):
        kw, kb = jax.random.split(k)
        bound = 1.0 / math.sqrt(fan_in)
        w = jax.random.uniform(kw, (fan_in, fan_out), jnp.float32, -bound, bound)
        b = jax.random.uniform(kb, (fan_out,), jnp.float32, -bound, bound)
        return w, b

    k1, k2, k3, k4 = jax.random.split(key, 4)
    w1, b1 = linear(k1, in_dim, HIDDEN_DIM)
    w2, b2 = linear(k2, HIDDEN_DIM, HIDDEN_DIM)
    wmu, bmu = linear(k3, HIDDEN_DIM, action_dim)
    wls, bls = linear(k4, HIDDEN_DIM, action_dim)
    return dict(w1=w1, b1=b1, w2=w2, b2=b2,
                wmu=wmu, bmu=bmu, wls=wls, bls=bls)


def pack_params(p, action_dim):
    """One-time conversion to the kernel-feeding layout:
       * weights cast to bf16 (halves weight DMA; dots accumulate in f32),
       * mu / log_std heads fused and zero-padded to a lane-dense 256-column
         slab (mu at column 0, log_std at column 128),
       * biases shaped [1, out] so they broadcast in-kernel."""
    H = p["w2"].shape[0]
    a = action_dim
    wh = jnp.zeros((H, 2 * HEAD_HALF), jnp.float32)
    wh = wh.at[:, :a].set(p["wmu"])
    wh = wh.at[:, HEAD_HALF:HEAD_HALF + a].set(p["wls"])
    bh = jnp.zeros((1, 2 * HEAD_HALF), jnp.float32)
    bh = bh.at[:, :a].set(p["bmu"].reshape(1, -1))
    bh = bh.at[:, HEAD_HALF:HEAD_HALF + a].set(p["bls"].reshape(1, -1))
    return dict(
        w1=p["w1"].astype(jnp.bfloat16), b1=p["b1"].reshape(1, -1),
        w2=p["w2"].astype(jnp.bfloat16), b2=p["b2"].reshape(1, -1),
        wh=wh.astype(jnp.bfloat16), bh=bh)


def _reference_forward(state, skill, packed, action_dim):
    """Pure-JAX f32 reference using the same packed (bf16-stored) weights."""
    x = jnp.concatenate([state, skill], axis=-1)
    h1 = jnp.maximum(x @ packed["w1"].astype(jnp.float32) + packed["b1"], 0.0)
    h2 = jnp.maximum(h1 @ packed["w2"].astype(jnp.float32) + packed["b2"], 0.0)
    heads = h2 @ packed["wh"].astype(jnp.float32) + packed["bh"]
    mu = heads[:, :action_dim]
    std = jnp.exp(jnp.clip(heads[:, HEAD_HALF:HEAD_HALF + action_dim], -20.0, 2.0))
    return mu, std


if __name__ == "__main__":
    # Small shapes consistent with the module's forward:
    #   batch=8, state_dim=16, skill_dim=8, action_dim=4, hidden=256.
    B, STATE_DIM, SKILL_DIM, ACTION_DIM = 8, 16, 8, 4

    key = jax.random.PRNGKey(0)
    k_params, k_state, k_skill = jax.random.split(key, 3)

    masters = init_params(k_params, STATE_DIM, SKILL_DIM, ACTION_DIM)
    packed = pack_params(masters, ACTION_DIM)

    state = jax.random.normal(k_state, (B, STATE_DIM), jnp.float32)
    skill = jax.random.normal(k_skill, (B, SKILL_DIM), jnp.float32)

    mu, std = jax.block_until_ready(
        skill_policy_forward(state, skill, packed, ACTION_DIM))
    mu_ref, std_ref = _reference_forward(state, skill, packed, ACTION_DIM)
    assert mu.shape == (B, ACTION_DIM) and std.shape == (B, ACTION_DIM)
    # bf16 dot operands -> looser tolerance than pure-f32 math.
    assert jnp.allclose(mu, mu_ref, atol=5e-2, rtol=5e-2)
    assert jnp.allclose(std, std_ref, atol=5e-2, rtol=5e-2)
    assert bool(jnp.all(std > 0.0))

    # Ragged batch: padded tail, >= 2 grid steps (megacore-friendly).
    B2 = 300
    k_s2, k_z2 = jax.random.split(jax.random.PRNGKey(1))
    state2 = jax.random.normal(k_s2, (B2, STATE_DIM), jnp.float32)
    skill2 = jax.random.normal(k_z2, (B2, SKILL_DIM), jnp.float32)
    mu2, std2 = jax.block_until_ready(
        skill_policy_forward(state2, skill2, packed, ACTION_DIM))
    mu2_ref, std2_ref = _reference_forward(state2, skill2, packed, ACTION_DIM)
    assert mu2.shape == (B2, ACTION_DIM) and std2.shape == (B2, ACTION_DIM)
    assert jnp.allclose(mu2, mu2_ref, atol=5e-2, rtol=5e-2)
    assert jnp.allclose(std2, std2_ref, atol=5e-2, rtol=5e-2)
    assert bool(jnp.all(std2 > 0.0))

    # Large batch: tile cap + multi-step grid, weights VMEM-resident.
    B3 = 1024
    k_s3, k_z3 = jax.random.split(jax.random.PRNGKey(2))
    state3 = jax.random.normal(k_s3, (B3, STATE_DIM), jnp.float32)
    skill3 = jax.random.normal(k_z3, (B3, SKILL_DIM), jnp.float32)
    mu3, std3 = jax.block_until_ready(
        skill_policy_forward(state3, skill3, packed, ACTION_DIM))
    mu3_ref, std3_ref = _reference_forward(state3, skill3, packed, ACTION_DIM)
    assert mu3.shape == (B3, ACTION_DIM) and std3.shape == (B3, ACTION_DIM)
    assert jnp.allclose(mu3, mu3_ref, atol=5e-2, rtol=5e-2)
    assert jnp.allclose(std3, std3_ref, atol=5e-2, rtol=5e-2)
    assert bool(jnp.all(std3 > 0.0))

    print("KERNEL_OK")
</pallas_src>

<mosaic_0001>
module attributes {stable_mosaic.version = 11 : i64} {
  func.func @_skill_policy_kernel(%arg0: i32, %arg1: memref<8x24xbf16, #tpu.memory_space<vmem>>, %arg2: memref<24x256xbf16, #tpu.memory_space<vmem>>, %arg3: memref<1x256xf32, #tpu.memory_space<vmem>>, %arg4: memref<256x256xbf16, #tpu.memory_space<vmem>>, %arg5: memref<1x256xf32, #tpu.memory_space<vmem>>, %arg6: memref<256x256xbf16, #tpu.memory_space<vmem>>, %arg7: memref<1x256xf32, #tpu.memory_space<vmem>>, %arg8: memref<8x256xf32, #tpu.memory_space<vmem>>) attributes {dimension_semantics = [#tpu.dimension_semantics<parallel>], iteration_bounds = array<i64: 1>, scalar_prefetch = 0 : i64, scratch_operands = 0 : i64, tpu.core_type = #tpu.core_type<tc>, window_params = [{transform_indices = @transform_0, window_bounds = array<i64: 8, 24>}, {pipeline_mode = #tpu.pipeline_mode<synchronous>, transform_indices = @transform_1, window_bounds = array<i64: 24, 256>}, {pipeline_mode = #tpu.pipeline_mode<synchronous>, transform_indices = @transform_2, window_bounds = array<i64: 1, 256>}, {pipeline_mode = #tpu.pipeline_mode<synchronous>, transform_indices = @transform_3, window_bounds = array<i64: 256, 256>}, {pipeline_mode = #tpu.pipeline_mode<synchronous>, transform_indices = @transform_4, window_bounds = array<i64: 1, 256>}, {pipeline_mode = #tpu.pipeline_mode<synchronous>, transform_indices = @transform_5, window_bounds = array<i64: 256, 256>}, {pipeline_mode = #tpu.pipeline_mode<synchronous>, transform_indices = @transform_6, window_bounds = array<i64: 1, 256>}, {transform_indices = @transform_7, window_bounds = array<i64: 8, 256>}]} {
    %c0 = arith.constant 0 : index
    %c0_0 = arith.constant 0 : index
    %0 = vector.load %arg1[%c0, %c0_0] : memref<8x24xbf16, #tpu.memory_space<vmem>>, vector<8x24xbf16>
    %c0_1 = arith.constant 0 : index
    %c0_2 = arith.constant 0 : index
    %1 = vector.load %arg2[%c0_1, %c0_2] : memref<24x256xbf16, #tpu.memory_space<vmem>>, vector<24x256xbf16>
    %cst = arith.constant dense<0.000000e+00> : vector<8x256xf32>
    %2 = tpu.matmul %0, %1, %cst {dimension_numbers = #tpu.dot_dimension_numbers<[1], [0], [0], [1], [0, 0, 1, 1], [], []>} : vector<8x24xbf16>, vector<24x256xbf16>, vector<8x256xf32> -> vector<8x256xf32>
    %c0_3 = arith.constant 0 : index
    %c0_4 = arith.constant 0 : index
    %3 = vector.load %arg3[%c0_3, %c0_4] : memref<1x256xf32, #tpu.memory_space<vmem>>, vector<1x256xf32>
    %4 = vector.broadcast %3 : vector<1x256xf32> to vector<8x256xf32>
    %5 = arith.addf %2, %4 : vector<8x256xf32>
    %cst_5 = arith.constant 0.000000e+00 : f32
    %6 = vector.broadcast %cst_5 : f32 to vector<8x256xf32>
    %7 = arith.maximumf %5, %6 : vector<8x256xf32>
    %8 = arith.truncf %7 : vector<8x256xf32> to vector<8x256xbf16>
    %c0_6 = arith.constant 0 : index
    %c0_7 = arith.constant 0 : index
    %9 = vector.load %arg4[%c0_6, %c0_7] : memref<256x256xbf16, #tpu.memory_space<vmem>>, vector<256x256xbf16>
    %cst_8 = arith.constant dense<0.000000e+00> : vector<8x256xf32>
    %10 = tpu.matmul %8, %9, %cst_8 {dimension_numbers = #tpu.dot_dimension_numbers<[1], [0], [0], [1], [0, 0, 1, 1], [], []>} : vector<8x256xbf16>, vector<256x256xbf16>, vector<8x256xf32> -> vector<8x256xf32>
    %c0_9 = arith.constant 0 : index
    %c0_10 = arith.constant 0 : index
    %11 = vector.load %arg5[%c0_9, %c0_10] : memref<1x256xf32, #tpu.memory_space<vmem>>, vector<1x256xf32>
    %12 = vector.broadcast %11 : vector<1x256xf32> to vector<8x256xf32>
    %13 = arith.addf %10, %12 : vector<8x256xf32>
    %cst_11 = arith.constant 0.000000e+00 : f32
    %14 = vector.broadcast %cst_11 : f32 to vector<8x256xf32>
    %15 = arith.maximumf %13, %14 : vector<8x256xf32>
    %16 = arith.truncf %15 : vector<8x256xf32> to vector<8x256xbf16>
    %c0_12 = arith.constant 0 : index
    %c0_13 = arith.constant 0 : index
    %17 = vector.load %arg6[%c0_12, %c0_13] : memref<256x256xbf16, #tpu.memory_space<vmem>>, vector<256x256xbf16>
    %cst_14 = arith.constant dense<0.000000e+00> : vector<8x256xf32>
    %18 = tpu.matmul %16, %17, %cst_14 {dimension_numbers = #tpu.dot_dimension_numbers<[1], [0], [0], [1], [0, 0, 1, 1], [], []>} : vector<8x256xbf16>, vector<256x256xbf16>, vector<8x256xf32> -> vector<8x256xf32>
    %c0_15 = arith.constant 0 : index
    %c0_16 = arith.constant 0 : index
    %19 = vector.load %arg7[%c0_15, %c0_16] : memref<1x256xf32, #tpu.memory_space<vmem>>, vector<1x256xf32>
    %20 = vector.broadcast %19 : vector<1x256xf32> to vector<8x256xf32>
    %21 = arith.addf %18, %20 : vector<8x256xf32>
    %22 = vector.extract_strided_slice %21 {offsets = [0, 0], sizes = [8, 128], strides = [1, 1]} : vector<8x256xf32> to vector<8x128xf32>
    %c0_17 = arith.constant 0 : index
    %c0_18 = arith.constant 0 : index
    %23 = vector.load %arg8[%c0_17, %c0_18] : memref<8x256xf32, #tpu.memory_space<vmem>>, vector<8x128xf32>
    tpu.vector_store %arg8[%c0_17, %c0_18], %22 {strides = array<i32>} : memref<8x256xf32, #tpu.memory_space<vmem>>, vector<8x128xf32>,
    %24 = vector.extract_strided_slice %21 {offsets = [0, 128], sizes = [8, 128], strides = [1, 1]} : vector<8x256xf32> to vector<8x128xf32>
    %cst_19 = arith.constant -2.000000e+01 : f32
    %cst_20 = arith.constant 2.000000e+00 : f32
    %25 = vector.broadcast %cst_19 : f32 to vector<8x128xf32>
    %26 = arith.maximumf %25, %24 : vector<8x128xf32>
    %27 = vector.broadcast %cst_20 : f32 to vector<8x128xf32>
    %28 = arith.minimumf %27, %26 : vector<8x128xf32>
    %29 = math.exp %28 : vector<8x128xf32>
    %c0_21 = arith.constant 0 : index
    %c128 = arith.constant 128 : index
    %30 = vector.load %arg8[%c0_21, %c128] : memref<8x256xf32, #tpu.memory_space<vmem>>, vector<8x128xf32>
    tpu.vector_store %arg8[%c0_21, %c128], %29 {strides = array<i32>} : memref<8x256xf32, #tpu.memory_space<vmem>>, vector<8x128xf32>,
    return
  }
  func.func @transform_0(%arg0: i32) -> (i32, i32) {
    %c0_i32 = arith.constant 0 : i32
    %c0_i32_0 = arith.constant 0 : i32
    return %arg0, %c0_i32 : i32, i32
  }
  func.func @transform_1(%arg0: i32) -> (i32, i32) {
    %c0_i32 = arith.constant 0 : i32
    %c0_i32_0 = arith.constant 0 : i32
    %c0_i32_1 = arith.constant 0 : i32
    return %c0_i32, %c0_i32_0 : i32, i32
  }
  func.func @transform_2(%arg0: i32) -> (i32, i32) {
    %c0_i32 = arith.constant 0 : i32
    %c0_i32_0 = arith.constant 0 : i32
    %c0_i32_1 = arith.constant 0 : i32
    return %c0_i32, %c0_i32_0 : i32, i32
  }
  func.func @transform_3(%arg0: i32) -> (i32, i32) {
    %c0_i32 = arith.constant 0 : i32
    %c0_i32_0 = arith.constant 0 : i32
    %c0_i32_1 = arith.constant 0 : i32
    return %c0_i32, %c0_i32_0 : i32, i32
  }
  func.func @transform_4(%arg0: i32) -> (i32, i32) {
    %c0_i32 = arith.constant 0 : i32
    %c0_i32_0 = arith.constant 0 : i32
    %c0_i32_1 = arith.constant 0 : i32
    return %c0_i32, %c0_i32_0 : i32, i32
  }
  func.func @transform_5(%arg0: i32) -> (i32, i32) {
    %c0_i32 = arith.constant 0 : i32
    %c0_i32_0 = arith.constant 0 : i32
    %c0_i32_1 = arith.constant 0 : i32
    return %c0_i32, %c0_i32_0 : i32, i32
  }
  func.func @transform_6(%arg0: i32) -> (i32, i32) {
    %c0_i32 = arith.constant 0 : i32
    %c0_i32_0 = arith.constant 0 : i32
    %c0_i32_1 = arith.constant 0 : i32
    return %c0_i32, %c0_i32_0 : i32, i32
  }
  func.func @transform_7(%arg0: i32) -> (i32, i32) {
    %c0_i32 = arith.constant 0 : i32
    %c0_i32_0 = arith.constant 0 : i32
    return %arg0, %c0_i32 : i32, i32
  }
}

</mosaic_0001>

<llo_original>
// kernel: tpu_custom_call.1
$region0: #{tpu_custom_call.1}
  #allocation0 [shape = 'u32[]', space=smem, size = 0x4, offset = 0x4, fixed_abs, tag = 'smem constant byte address 0x4 - core index']
  #allocation1 [shape = 'u32[72,128]{1,0:T(1,128)}', space=vmem, size = 0x9000, scoped, tag = 'internal scratch']
  %s0 = inlined_call_operand.hbm [shape: bf16[8,24], index: 0, kind: input, shape index: {}]
  %s1 = inlined_call_operand.hbm [shape: bf16[24,256], index: 1, kind: input, shape index: {}]
  %s2 = inlined_call_operand.hbm [shape: f32[1,256], index: 2, kind: input, shape index: {}]
  %s3 = inlined_call_operand.hbm [shape: bf16[256,256], index: 3, kind: input, shape index: {}]
  %s4 = inlined_call_operand.vmem [shape: f32[1,256], index: 4, kind: input, shape index: {}]
  %s5 = inlined_call_operand.hbm [shape: bf16[256,256], index: 5, kind: input, shape index: {}]
  %s6 = inlined_call_operand.vmem [shape: f32[1,256], index: 6, kind: input, shape index: {}]
  %s7 = inlined_call_operand.hbm [shape: f32[8,256], index: 7, kind: output, shape index: {}]
  %s8 = sld [smem:[#allocation0]]
  $region58: #{tpu_custom_call.1} parent=0
    _
  %s10 = ssub.s32 1, %s8
  %s11 = scalar_select 0, %s10, %s8
  $region1: #{tpu_custom_call.1} parent=0
    #allocation2 [shape = 'u8[2048]{0}', space=vmem, size = 0x800, scoped, tag = 'input window, operand 0, single buffered']
    #allocation3 [shape = 's32[1]{0}', space=sflag, size = 0x4, scoped, tag = 'scoped memory for tpu_custom_call.1']
    #allocation4 [shape = 's32[1]{0}', space=sflag, size = 0x4, scoped, tag = 'scoped memory for tpu_custom_call.1']
    #allocation5 [shape = 'u8[12288]{0}', space=vmem, size = 0x3000, scoped, tag = 'input window, operand 1, single buffered']
    #allocation6 [shape = 's32[1]{0}', space=sflag, size = 0x4, scoped, tag = 'scoped memory for tpu_custom_call.1']
    #allocation7 [shape = 'u8[1024]{0}', space=vmem, size = 0x400, scoped, tag = 'input window, operand 2, single buffered']
    #allocation8 [shape = 'u8[131072]{0}', space=vmem, size = 0x20000, scoped, tag = 'input window, operand 3, single buffered']
    #allocation9 [shape = 's32[1]{0}', space=sflag, size = 0x4, scoped, tag = 'scoped memory for tpu_custom_call.1']
    #allocation10 [shape = 'u8[131072]{0}', space=vmem, size = 0x20000, scoped, tag = 'input window, operand 5, single buffered']
    #allocation11 [shape = 'u8[8192]{0}', space=vmem, size = 0x2000, scoped, tag = 'output window, operand 0, single buffered']
    %12 = vsyncpa [#allocation3], 0
    %13 = vsyncpa [#allocation6], 0
    %14 = vsyncpa [#allocation9], 0
    %15 = vsyncpa [#allocation4], 0
    // Predicated region
    $region2: #{tpu_custom_call.1} parent=1 // pred_check
      _
    $region3: #{tpu_custom_call.1} parent=1 // pred_check_branch
      %17 = sbr.rel (0) target = $region5
    $region4: #{tpu_custom_call.1} parent=1 // pred_region
      %19 = vsyncadd [#allocation3], 0
      %s21 = sshll.u32 %s0, 4
      %s22 = int_to_ptr.hbm [resolvable:$true] %s21
      %s23 = sshll.u32 [#allocation2], 4
      %s24 = int_to_ptr.vmem [resolvable:$true] %s23
      %26 = dma.hbm_to_vmem [thread:$0]  %s22, 64, %s24, [#allocation3]
    $region5: #{tpu_custom_call.1} parent=1 // pred_fallthru
      _
    // Predicated region
    $region6: #{tpu_custom_call.1} parent=1 // pred_check
      _
    $region7: #{tpu_custom_call.1} parent=1 // pred_check_branch
      %28 = sbr.rel (0) target = $region9
    $region8: #{tpu_custom_call.1} parent=1 // pred_region
      %30 = vsyncadd [#allocation6], 0
      %s31 = sshll.u32 %s1, 4
      %s32 = int_to_ptr.hbm [resolvable:$true] %s31
      %s33 = sshll.u32 [#allocation5], 4
      %s34 = int_to_ptr.vmem [resolvable:$true] %s33
      %39 = dma.hbm_to_vmem [thread:$0]  %s32, 384, %s34, [#allocation6], 128, 128, 8
    $region9: #{tpu_custom_call.1} parent=1 // pred_fallthru
      _
    // Predicated region
    $region10: #{tpu_custom_call.1} parent=1 // pred_check
      _
    $region11: #{tpu_custom_call.1} parent=1 // pred_check_branch
      %41 = sbr.rel (0) target = $region13
    $region12: #{tpu_custom_call.1} parent=1 // pred_region
      %43 = vsyncadd [#allocation6], 0
      %s45 = sshll.u32 %s2, 4
      %s46 = int_to_ptr.hbm [resolvable:$true] %s45
      %s47 = sshll.u32 [#allocation7], 4
      %s48 = int_to_ptr.vmem [resolvable:$true] %s47
      %50 = dma.hbm_to_vmem [thread:$0]  %s46, 32, %s48, [#allocation6]
    $region13: #{tpu_custom_call.1} parent=1 // pred_fallthru
      _
    // Predicated region
    $region14: #{tpu_custom_call.1} parent=1 // pred_check
      _
    $region15: #{tpu_custom_call.1} parent=1 // pred_check_branch
      %52 = sbr.rel (0) target = $region17
    $region16: #{tpu_custom_call.1} parent=1 // pred_region
      %54 = vsyncadd [#allocation9], 0
      %s55 = sshll.u32 %s3, 4
      %s56 = int_to_ptr.hbm [resolvable:$true] %s55
      %s57 = sshll.u32 [#allocation8], 4
      %s58 = int_to_ptr.vmem [resolvable:$true] %s57
      %63 = dma.hbm_to_vmem [thread:$0]  %s56, 4096, %s58, [#allocation9], 128, 128, 8
    $region17: #{tpu_custom_call.1} parent=1 // pred_fallthru
      _
    // Predicated region
    $region18: #{tpu_custom_call.1} parent=1 // pred_check
      _
    $region19: #{tpu_custom_call.1} parent=1 // pred_check_branch
      %65 = sbr.rel (0) target = $region21
    $region20: #{tpu_custom_call.1} parent=1 // pred_region
      _
    $region21: #{tpu_custom_call.1} parent=1 // pred_fallthru
      _
    // Predicated region
    $region22: #{tpu_custom_call.1} parent=1 // pred_check
      _
    $region23: #{tpu_custom_call.1} parent=1 // pred_check_branch
      %67 = sbr.rel (0) target = $region25
    $region24: #{tpu_custom_call.1} parent=1 // pred_region
      %69 = vsyncadd [#allocation9], 0
      %s70 = sshll.u32 %s5, 4
      %s71 = int_to_ptr.hbm [resolvable:$true] %s70
      %s72 = sshll.u32 [#allocation10], 4
      %s73 = int_to_ptr.vmem [resolvable:$true] %s72
      %78 = dma.hbm_to_vmem [thread:$0]  %s71, 4096, %s73, [#allocation9], 128, 128, 8
    $region25: #{tpu_custom_call.1} parent=1 // pred_fallthru
      _
    // Predicated region
    $region26: #{tpu_custom_call.1} parent=1 // pred_check
      _
    $region27: #{tpu_custom_call.1} parent=1 // pred_check_branch
      %80 = sbr.rel (0) target = $region29
    $region28: #{tpu_custom_call.1} parent=1 // pred_region
      _
    $region29: #{tpu_custom_call.1} parent=1 // pred_fallthru
      _
    // Predicated region
    $region30: #{tpu_custom_call.1} parent=1 // pred_check
      _
    $region31: #{tpu_custom_call.1} parent=1 // pred_check_branch
      %82 = sbr.rel (0) target = $region33
    $region32: #{tpu_custom_call.1} parent=1 // pred_region
      %84 = dma.done [#allocation3], 64
    $region33: #{tpu_custom_call.1} parent=1 // pred_fallthru
      _
    // Predicated region
    $region34: #{tpu_custom_call.1} parent=1 // pred_check
      _
    $region35: #{tpu_custom_call.1} parent=1 // pred_check_branch
      %86 = sbr.rel (0) target = $region37
    $region36: #{tpu_custom_call.1} parent=1 // pred_region
      %88 = dma.done [#allocation6], 384
    $region37: #{tpu_custom_call.1} parent=1 // pred_fallthru
      _
    // Predicated region
    $region38: #{tpu_custom_call.1} parent=1 // pred_check
      _
    $region39: #{tpu_custom_call.1} parent=1 // pred_check_branch
      %90 = sbr.rel (0) target = $region41
    $region40: #{tpu_custom_call.1} parent=1 // pred_region
      %92 = dma.done [#allocation6], 32
    $region41: #{tpu_custom_call.1} parent=1 // pred_fallthru
      _
    // Predicated region
    $region42: #{tpu_custom_call.1} parent=1 // pred_check
      _
    $region43: #{tpu_custom_call.1} parent=1 // pred_check_branch
      %94 = sbr.rel (0) target = $region45
    $region44: #{tpu_custom_call.1} parent=1 // pred_region
      %96 = dma.done [#allocation9], 4096
    $region45: #{tpu_custom_call.1} parent=1 // pred_fallthru
      _
    // Predicated region
    $region46: #{tpu_custom_call.1} parent=1 // pred_check
      _
    $region47: #{tpu_custom_call.1} parent=1 // pred_check_branch
      %98 = sbr.rel (0) target = $region49
    $region48: #{tpu_custom_call.1} parent=1 // pred_region
      %100 = dma.done [#allocation9], 4096
    $region49: #{tpu_custom_call.1} parent=1 // pred_fallthru
      _
    %v102 = vld [vmem:[#allocation2] sm:$0xf]
    %v103 = vld [vmem:[#allocation5] sm:$0xff]
    %v104 = vld [vmem:[#allocation5 + $0x8] sm:$0xff]
    %v105 = vld [vmem:[#allocation5 + $0x10] sm:$0xff]
    %v106 = vld [vmem:[#allocation7] sm:$0x3]
    %v108 = vperm.slane %v106, 0
    %v109 = vperm.slane %v106, 1
    %v115 = vunpack.c.l.b16 %v103
    %v116 = vunpack.c.h.b16 %v103
    %v117 = vunpack.c.l.b16 %v104
    %v118 = vunpack.c.h.b16 %v104
    %v119 = vunpack.c.l.b16 %v105
    %v120 = vunpack.c.h.b16 %v105
    %v121 = vpack.c.b16 %v117, %v115
    %v122 = vpack.c.b16 %v118, %v116
    %v123 = vpack.c.b16 %v119, %v119
    %v124 = vpack.c.b16 %v120, %v120
    %vm127 = vcmask 195584
    %v129 = vsel %vm127, %v102, 0
    %vm131 = vcmask 1043456
    %v133 = vsel %vm131, %v123, 0
    %v136 = vsel %vm131, %v124, 0
    %138 = vmatpush.bf16.msra.mxu0 0
    %139 = vmatpush.bf16.msra.mxu0 0
    %140 = vmatpush.bf16.msra.mxu0 0
    %141 = vmatpush.bf16.msra.mxu0 0
    %142 = vmatpush.bf16.msra.mxu0 0
    %143 = vmatpush.bf16.msra.mxu0 0
    %144 = vmatpush.bf16.msra.mxu0 %v133
    %145 = vmatpush.bf16.msra.mxu0 %v121
    %146 = vmatmul.bf16.gmra.mxu0 %v129
    %v147 = vpop.f32.mrf.mxu0
    %v148 = vadd.f32 %v108, %v147
    %v149 = vpop.f32.mrf.mxu0
    %150 = vdwg.mxu0
    %151 = vmatpush.bf16.msra.mxu0 0
    %152 = vmatpush.bf16.msra.mxu0 0
    %153 = vmatpush.bf16.msra.mxu0 0
    %154 = vmatpush.bf16.msra.mxu0 0
    %155 = vmatpush.bf16.msra.mxu0 0
    %156 = vmatpush.bf16.msra.mxu0 0
    %157 = vmatpush.bf16.msra.mxu0 %v136
    %158 = vmatpush.bf16.msra.mxu0 %v122
    %159 = vmatmul.bf16.gmra.mxu0 %v129
    %v160 = vpop.f32.mrf.mxu0
    %v161 = vadd.f32 %v109, %v160
    %v162 = vpop.f32.mrf.mxu0
    %163 = vdwg.mxu0
    %v164 = vmax.f32 %v148, 0.0
    %v165 = vmax.f32 %v161, 0.0
    %v166 = vpack.c.bf16 %v164, %v164
    %v167 = vpack.c.bf16 %v165, %v165
    %v168 = vld [vmem:[#allocation8] sm:$0xff]
    %v169 = vld [vmem:[#allocation8 + $0x8] sm:$0xff]
    %v170 = vld [vmem:[#allocation8 + $0x10] sm:$0xff]
    %v171 = vld [vmem:[#allocation8 + $0x18] sm:$0xff]
    %v172 = vld [vmem:[#allocation8 + $0x20] sm:$0xff]
    %v173 = vld [vmem:[#allocation8 + $0x28] sm:$0xff]
    %v174 = vld [vmem:[#allocation8 + $0x30] sm:$0xff]
    %v175 = vld [vmem:[#allocation8 + $0x38] sm:$0xff]
    %v176 = vld [vmem:[#allocation8 + $0x40] sm:$0xff]
    %v177 = vld [vmem:[#allocation8 + $0x48] sm:$0xff]
    %v178 = vld [vmem:[#allocation8 + $0x50] sm:$0xff]
    %v179 = vld [vmem:[#allocation8 + $0x58] sm:$0xff]
    %v180 = vld [vmem:[#allocation8 + $0x60] sm:$0xff]
    %v181 = vld [vmem:[#allocation8 + $0x68] sm:$0xff]
    %v182 = vld [vmem:[#allocation8 + $0x70] sm:$0xff]
    %v183 = vld [vmem:[#allocation8 + $0x78] sm:$0xff]
    %v184 = vld [vmem:[#allocation8 + $0x80] sm:$0xff]
    %v185 = vld [vmem:[#allocation8 + $0x88] sm:$0xff]
    %v186 = vld [vmem:[#allocation8 + $0x90] sm:$0xff]
    %v187 = vld [vmem:[#allocation8 + $0x98] sm:$0xff]
    %v188 = vld [vmem:[#allocation8 + $0xa0] sm:$0xff]
    %v189 = vld [vmem:[#allocation8 + $0xa8] sm:$0xff]
    %v190 = vld [vmem:[#allocation8 + $0xb0] sm:$0xff]
    %v191 = vld [vmem:[#allocation8 + $0xb8] sm:$0xff]
    %v192 = vld [vmem:[#allocation8 + $0xc0] sm:$0xff]
    %v193 = vld [vmem:[#allocation8 + $0xc8] sm:$0xff]
    %v194 = vld [vmem:[#allocation8 + $0xd0] sm:$0xff]
    %v195 = vld [vmem:[#allocation8 + $0xd8] sm:$0xff]
    %v196 = vld [vmem:[#allocation8 + $0xe0] sm:$0xff]
    %v197 = vld [vmem:[#allocation8 + $0xe8] sm:$0xff]
    %v198 = vld [vmem:[#allocation8 + $0xf0] sm:$0xff]
    %v199 = vld [vmem:[#allocation8 + $0xf8] sm:$0xff]
    %v200 = vld [vmem:[%s4] sm:$0x3]
    %v202 = vperm.slane %v200, 0
    %v203 = vperm.slane %v200, 1
    %v238 = vunpack.c.l.b16 %v168
    %v239 = vunpack.c.h.b16 %v168
    %v240 = vunpack.c.l.b16 %v169
    %v241 = vunpack.c.h.b16 %v169
    %v242 = vunpack.c.l.b16 %v170
    %v243 = vunpack.c.h.b16 %v170
    %v244 = vunpack.c.l.b16 %v171
    %v245 = vunpack.c.h.b16 %v171
    %v246 = vunpack.c.l.b16 %v172
    %v247 = vunpack.c.h.b16 %v172
    %v248 = vunpack.c.l.b16 %v173
    %v249 = vunpack.c.h.b16 %v173
    %v250 = vunpack.c.l.b16 %v174
    %v251 = vunpack.c.h.b16 %v174
    %v252 = vunpack.c.l.b16 %v175
    %v253 = vunpack.c.h.b16 %v175
    %v254 = vunpack.c.l.b16 %v176
    %v255 = vunpack.c.h.b16 %v176
    %v256 = vunpack.c.l.b16 %v177
    %v257 = vunpack.c.h.b16 %v177
    %v258 = vunpack.c.l.b16 %v178
    %v259 = vunpack.c.h.b16 %v178
    %v260 = vunpack.c.l.b16 %v179
    %v261 = vunpack.c.h.b16 %v179
    %v262 = vunpack.c.l.b16 %v180
    %v263 = vunpack.c.h.b16 %v180
    %v264 = vunpack.c.l.b16 %v181
    %v265 = vunpack.c.h.b16 %v181
    %v266 = vunpack.c.l.b16 %v182
    %v267 = vunpack.c.h.b16 %v182
    %v268 = vunpack.c.l.b16 %v183
    %v269 = vunpack.c.h.b16 %v183
    %v270 = vunpack.c.l.b16 %v184
    %v271 = vunpack.c.h.b16 %v184
    %v272 = vunpack.c.l.b16 %v185
    %v273 = vunpack.c.h.b16 %v185
    %v274 = vunpack.c.l.b16 %v186
    %v275 = vunpack.c.h.b16 %v186
    %v276 = vunpack.c.l.b16 %v187
    %v277 = vunpack.c.h.b16 %v187
    %v278 = vunpack.c.l.b16 %v188
    %v279 = vunpack.c.h.b16 %v188
    %v280 = vunpack.c.l.b16 %v189
    %v281 = vunpack.c.h.b16 %v189
    %v282 = vunpack.c.l.b16 %v190
    %v283 = vunpack.c.h.b16 %v190
    %v284 = vunpack.c.l.b16 %v191
    %v285 = vunpack.c.h.b16 %v191
    %v286 = vunpack.c.l.b16 %v192
    %v287 = vunpack.c.h.b16 %v192
    %v288 = vunpack.c.l.b16 %v193
    %v289 = vunpack.c.h.b16 %v193
    %v290 = vunpack.c.l.b16 %v194
    %v291 = vunpack.c.h.b16 %v194
    %v292 = vunpack.c.l.b16 %v195
    %v293 = vunpack.c.h.b16 %v195
    %v294 = vunpack.c.l.b16 %v196
    %v295 = vunpack.c.h.b16 %v196
    %v296 = vunpack.c.l.b16 %v197
    %v297 = vunpack.c.h.b16 %v197
    %v298 = vunpack.c.l.b16 %v198
    %v299 = vunpack.c.h.b16 %v198
    %v300 = vunpack.c.l.b16 %v199
    %v301 = vunpack.c.h.b16 %v199
    %v302 = vpack.c.b16 %v240, %v238
    %v303 = vpack.c.b16 %v241, %v239
    %v304 = vpack.c.b16 %v244, %v242
    %v305 = vpack.c.b16 %v245, %v243
    %v306 = vpack.c.b16 %v248, %v246
    %v307 = vpack.c.b16 %v249, %v247
    %v308 = vpack.c.b16 %v252, %v250
    %v309 = vpack.c.b16 %v253, %v251
    %v310 = vpack.c.b16 %v256, %v254
    %v311 = vpack.c.b16 %v257, %v255
    %v312 = vpack.c.b16 %v260, %v258
    %v313 = vpack.c.b16 %v261, %v259
    %v314 = vpack.c.b16 %v264, %v262
    %v315 = vpack.c.b16 %v265, %v263
    %v316 = vpack.c.b16 %v268, %v266
    %v317 = vpack.c.b16 %v269, %v267
    %v318 = vpack.c.b16 %v272, %v270
    %v319 = vpack.c.b16 %v273, %v271
    %v320 = vpack.c.b16 %v276, %v274
    %v321 = vpack.c.b16 %v277, %v275
    %v322 = vpack.c.b16 %v280, %v278
    %v323 = vpack.c.b16 %v281, %v279
    %v324 = vpack.c.b16 %v284, %v282
    %v325 = vpack.c.b16 %v285, %v283
    %v326 = vpack.c.b16 %v288, %v286
    %v327 = vpack.c.b16 %v289, %v287
    %v328 = vpack.c.b16 %v292, %v290
    %v329 = vpack.c.b16 %v293, %v291
    %v330 = vpack.c.b16 %v296, %v294
    %v331 = vpack.c.b16 %v297, %v295
    %v332 = vpack.c.b16 %v300, %v298
    %v333 = vpack.c.b16 %v301, %v299
    %366 = vmatpush.bf16.msra.mxu0 %v316
    %367 = vmatpush.bf16.msra.mxu0 %v314
    %368 = vmatpush.bf16.msra.mxu0 %v312
    %369 = vmatpush.bf16.msra.mxu0 %v310
    %370 = vmatpush.bf16.msra.mxu0 %v308
    %371 = vmatpush.bf16.msra.mxu0 %v306
    %372 = vmatpush.bf16.msra.mxu0 %v304
    %373 = vmatpush.bf16.msra.mxu0 %v302
    %374 = vmatmul.bf16.gmra.mxu0 %v166
    %v375 = vpop.f32.mrf.mxu0
    %v376 = vadd.f32 %v202, %v375
    %v377 = vpop.f32.mrf.mxu0
    %378 = vdwg.mxu0
    %379 = vmatpush.bf16.msra.mxu0 %v332
    %380 = vmatpush.bf16.msra.mxu0 %v330
    %381 = vmatpush.bf16.msra.mxu0 %v328
    %382 = vmatpush.bf16.msra.mxu0 %v326
    %383 = vmatpush.bf16.msra.mxu0 %v324
    %384 = vmatpush.bf16.msra.mxu0 %v322
    %385 = vmatpush.bf16.msra.mxu0 %v320
    %386 = vmatpush.bf16.msra.mxu0 %v318
    %387 = vmatmul.bf16.gmra.mxu0 %v167
    %v388 = vpop.f32.mrf.mxu0
    %v389 = vadd.f32 %v376, %v388
    %v390 = vpop.f32.mrf.mxu0
    %391 = vdwg.mxu0
    %392 = vmatpush.bf16.msra.mxu0 %v317
    %393 = vmatpush.bf16.msra.mxu0 %v315
    %394 = vmatpush.bf16.msra.mxu0 %v313
    %395 = vmatpush.bf16.msra.mxu0 %v311
    %396 = vmatpush.bf16.msra.mxu0 %v309
    %397 = vmatpush.bf16.msra.mxu0 %v307
    %398 = vmatpush.bf16.msra.mxu0 %v305
    %399 = vmatpush.bf16.msra.mxu0 %v303
    %400 = vmatmul.bf16.gmra.mxu0 %v166
    %v401 = vpop.f32.mrf.mxu0
    %v402 = vadd.f32 %v203, %v401
    %v403 = vpop.f32.mrf.mxu0
    %404 = vdwg.mxu0
    %405 = vmatpush.bf16.msra.mxu0 %v333
    %406 = vmatpush.bf16.msra.mxu0 %v331
    %407 = vmatpush.bf16.msra.mxu0 %v329
    %408 = vmatpush.bf16.msra.mxu0 %v327
    %409 = vmatpush.bf16.msra.mxu0 %v325
    %410 = vmatpush.bf16.msra.mxu0 %v323
    %411 = vmatpush.bf16.msra.mxu0 %v321
    %412 = vmatpush.bf16.msra.mxu0 %v319
    %413 = vmatmul.bf16.gmra.mxu0 %v167
    %v414 = vpop.f32.mrf.mxu0
    %v415 = vadd.f32 %v402, %v414
    %v416 = vpop.f32.mrf.mxu0
    %417 = vdwg.mxu0
    %v418 = vmax.f32 %v389, 0.0
    %v419 = vmax.f32 %v415, 0.0
    %v420 = vpack.c.bf16 %v418, %v418
    %v421 = vpack.c.bf16 %v419, %v419
    %v422 = vld [vmem:[#allocation10] sm:$0xff]
    %v423 = vld [vmem:[#allocation10 + $0x8] sm:$0xff]
    %v424 = vld [vmem:[#allocation10 + $0x10] sm:$0xff]
    %v425 = vld [vmem:[#allocation10 + $0x18] sm:$0xff]
    %v426 = vld [vmem:[#allocation10 + $0x20] sm:$0xff]
    %v427 = vld [vmem:[#allocation10 + $0x28] sm:$0xff]
    %v428 = vld [vmem:[#allocation10 + $0x30] sm:$0xff]
    %v429 = vld [vmem:[#allocation10 + $0x38] sm:$0xff]
    %v430 = vld [vmem:[#allocation10 + $0x40] sm:$0xff]
    %v431 = vld [vmem:[#allocation10 + $0x48] sm:$0xff]
    %v432 = vld [vmem:[#allocation10 + $0x50] sm:$0xff]
    %v433 = vld [vmem:[#allocation10 + $0x58] sm:$0xff]
    %v434 = vld [vmem:[#allocation10 + $0x60] sm:$0xff]
    %v435 = vld [vmem:[#allocation10 + $0x68] sm:$0xff]
    %v436 = vld [vmem:[#allocation10 + $0x70] sm:$0xff]
    %v437 = vld [vmem:[#allocation10 + $0x78] sm:$0xff]
    %v438 = vld [vmem:[#allocation10 + $0x80] sm:$0xff]
    %v439 = vld [vmem:[#allocation10 + $0x88] sm:$0xff]
    %v440 = vld [vmem:[#allocation10 + $0x90] sm:$0xff]
    %v441 = vld [vmem:[#allocation10 + $0x98] sm:$0xff]
    %v442 = vld [vmem:[#allocation10 + $0xa0] sm:$0xff]
    %v443 = vld [vmem:[#allocation10 + $0xa8] sm:$0xff]
    %v444 = vld [vmem:[#allocation10 + $0xb0] sm:$0xff]
    %v445 = vld [vmem:[#allocation10 + $0xb8] sm:$0xff]
    %v446 = vld [vmem:[#allocation10 + $0xc0] sm:$0xff]
    %v447 = vld [vmem:[#allocation10 + $0xc8] sm:$0xff]
    %v448 = vld [vmem:[#allocation10 + $0xd0] sm:$0xff]
    %v449 = vld [vmem:[#allocation10 + $0xd8] sm:$0xff]
    %v450 = vld [vmem:[#allocation10 + $0xe0] sm:$0xff]
    %v451 = vld [vmem:[#allocation10 + $0xe8] sm:$0xff]
    %v452 = vld [vmem:[#allocation10 + $0xf0] sm:$0xff]
    %v453 = vld [vmem:[#allocation10 + $0xf8] sm:$0xff]
    %v454 = vld [vmem:[%s6] sm:$0x3]
    %v456 = vperm.slane %v454, 0
    %v457 = vperm.slane %v454, 1
    %v492 = vunpack.c.l.b16 %v422
    %v493 = vunpack.c.h.b16 %v422
    %v494 = vunpack.c.l.b16 %v423
    %v495 = vunpack.c.h.b16 %v423
    %v496 = vunpack.c.l.b16 %v424
    %v497 = vunpack.c.h.b16 %v424
    %v498 = vunpack.c.l.b16 %v425
    %v499 = vunpack.c.h.b16 %v425
    %v500 = vunpack.c.l.b16 %v426
    %v501 = vunpack.c.h.b16 %v426
    %v502 = vunpack.c.l.b16 %v427
    %v503 = vunpack.c.h.b16 %v427
    %v504 = vunpack.c.l.b16 %v428
    %v505 = vunpack.c.h.b16 %v428
    %v506 = vunpack.c.l.b16 %v429
    %v507 = vunpack.c.h.b16 %v429
    %v508 = vunpack.c.l.b16 %v430
    %v509 = vunpack.c.h.b16 %v430
    %v510 = vunpack.c.l.b16 %v431
    %v511 = vunpack.c.h.b16 %v431
    %v512 = vunpack.c.l.b16 %v432
    %v513 = vunpack.c.h.b16 %v432
    %v514 = vunpack.c.l.b16 %v433
    %v515 = vunpack.c.h.b16 %v433
    %v516 = vunpack.c.l.b16 %v434
    %v517 = vunpack.c.h.b16 %v434
    %v518 = vunpack.c.l.b16 %v435
    %v519 = vunpack.c.h.b16 %v435
    %v520 = vunpack.c.l.b16 %v436
    %v521 = vunpack.c.h.b16 %v436
    %v522 = vunpack.c.l.b16 %v437
    %v523 = vunpack.c.h.b16 %v437
    %v524 = vunpack.c.l.b16 %v438
    %v525 = vunpack.c.h.b16 %v438
    %v526 = vunpack.c.l.b16 %v439
    %v527 = vunpack.c.h.b16 %v439
    %v528 = vunpack.c.l.b16 %v440
    %v529 = vunpack.c.h.b16 %v440
    %v530 = vunpack.c.l.b16 %v441
    %v531 = vunpack.c.h.b16 %v441
    %v532 = vunpack.c.l.b16 %v442
    %v533 = vunpack.c.h.b16 %v442
    %v534 = vunpack.c.l.b16 %v443
    %v535 = vunpack.c.h.b16 %v443
    %v536 = vunpack.c.l.b16 %v444
    %v537 = vunpack.c.h.b16 %v444
    %v538 = vunpack.c.l.b16 %v445
    %v539 = vunpack.c.h.b16 %v445
    %v540 = vunpack.c.l.b16 %v446
    %v541 = vunpack.c.h.b16 %v446
    %v542 = vunpack.c.l.b16 %v447
    %v543 = vunpack.c.h.b16 %v447
    %v544 = vunpack.c.l.b16 %v448
    %v545 = vunpack.c.h.b16 %v448
    %v546 = vunpack.c.l.b16 %v449
    %v547 = vunpack.c.h.b16 %v449
    %v548 = vunpack.c.l.b16 %v450
    %v549 = vunpack.c.h.b16 %v450
    %v550 = vunpack.c.l.b16 %v451
    %v551 = vunpack.c.h.b16 %v451
    %v552 = vunpack.c.l.b16 %v452
    %v553 = vunpack.c.h.b16 %v452
    %v554 = vunpack.c.l.b16 %v453
    %v555 = vunpack.c.h.b16 %v453
    %v556 = vpack.c.b16 %v494, %v492
    %v557 = vpack.c.b16 %v495, %v493
    %v558 = vpack.c.b16 %v498, %v496
    %v559 = vpack.c.b16 %v499, %v497
    %v560 = vpack.c.b16 %v502, %v500
    %v561 = vpack.c.b16 %v503, %v501
    %v562 = vpack.c.b16 %v506, %v504
    %v563 = vpack.c.b16 %v507, %v505
    %v564 = vpack.c.b16 %v510, %v508
    %v565 = vpack.c.b16 %v511, %v509
    %v566 = vpack.c.b16 %v514, %v512
    %v567 = vpack.c.b16 %v515, %v513
    %v568 = vpack.c.b16 %v518, %v516
    %v569 = vpack.c.b16 %v519, %v517
    %v570 = vpack.c.b16 %v522, %v520
    %v571 = vpack.c.b16 %v523, %v521
    %v572 = vpack.c.b16 %v526, %v524
    %v573 = vpack.c.b16 %v527, %v525
    %v574 = vpack.c.b16 %v530, %v528
    %v575 = vpack.c.b16 %v531, %v529
    %v576 = vpack.c.b16 %v534, %v532
    %v577 = vpack.c.b16 %v535, %v533
    %v578 = vpack.c.b16 %v538, %v536
    %v579 = vpack.c.b16 %v539, %v537
    %v580 = vpack.c.b16 %v542, %v540
    %v581 = vpack.c.b16 %v543, %v541
    %v582 = vpack.c.b16 %v546, %v544
    %v583 = vpack.c.b16 %v547, %v545
    %v584 = vpack.c.b16 %v550, %v548
    %v585 = vpack.c.b16 %v551, %v549
    %v586 = vpack.c.b16 %v554, %v552
    %v587 = vpack.c.b16 %v555, %v553
    %620 = vmatpush.bf16.msra.mxu0 %v570
    %621 = vmatpush.bf16.msra.mxu0 %v568
    %622 = vmatpush.bf16.msra.mxu0 %v566
    %623 = vmatpush.bf16.msra.mxu0 %v564
    %624 = vmatpush.bf16.msra.mxu0 %v562
    %625 = vmatpush.bf16.msra.mxu0 %v560
    %626 = vmatpush.bf16.msra.mxu0 %v558
    %627 = vmatpush.bf16.msra.mxu0 %v556
    %628 = vmatmul.bf16.gmra.mxu0 %v420
    %v629 = vpop.f32.mrf.mxu0
    %v630 = vadd.f32 %v456, %v629
    %v631 = vpop.f32.mrf.mxu0
    %632 = vdwg.mxu0
    %633 = vmatpush.bf16.msra.mxu0 %v586
    %634 = vmatpush.bf16.msra.mxu0 %v584
    %635 = vmatpush.bf16.msra.mxu0 %v582
    %636 = vmatpush.bf16.msra.mxu0 %v580
    %637 = vmatpush.bf16.msra.mxu0 %v578
    %638 = vmatpush.bf16.msra.mxu0 %v576
    %639 = vmatpush.bf16.msra.mxu0 %v574
    %640 = vmatpush.bf16.msra.mxu0 %v572
    %641 = vmatmul.bf16.gmra.mxu0 %v421
    %v642 = vpop.f32.mrf.mxu0
    %v643 = vadd.f32 %v630, %v642
    %v644 = vpop.f32.mrf.mxu0
    %645 = vdwg.mxu0
    %646 = vmatpush.bf16.msra.mxu0 %v571
    %647 = vmatpush.bf16.msra.mxu0 %v569
    %648 = vmatpush.bf16.msra.mxu0 %v567
    %649 = vmatpush.bf16.msra.mxu0 %v565
    %650 = vmatpush.bf16.msra.mxu0 %v563
    %651 = vmatpush.bf16.msra.mxu0 %v561
    %652 = vmatpush.bf16.msra.mxu0 %v559
    %653 = vmatpush.bf16.msra.mxu0 %v557
    %654 = vmatmul.bf16.gmra.mxu0 %v420
    %v655 = vpop.f32.mrf.mxu0
    %v656 = vadd.f32 %v457, %v655
    %v657 = vpop.f32.mrf.mxu0
    %658 = vdwg.mxu0
    %659 = vmatpush.bf16.msra.mxu0 %v587
    %660 = vmatpush.bf16.msra.mxu0 %v585
    %661 = vmatpush.bf16.msra.mxu0 %v583
    %662 = vmatpush.bf16.msra.mxu0 %v581
    %663 = vmatpush.bf16.msra.mxu0 %v579
    %664 = vmatpush.bf16.msra.mxu0 %v577
    %665 = vmatpush.bf16.msra.mxu0 %v575
    %666 = vmatpush.bf16.msra.mxu0 %v573
    %667 = vmatmul.bf16.gmra.mxu0 %v421
    %v668 = vpop.f32.mrf.mxu0
    %v669 = vadd.f32 %v656, %v668
    %v670 = vpop.f32.mrf.mxu0
    %671 = vdwg.mxu0
    %672 = vst [vmem:[#allocation11] sm:$0xff] %v643
    %v673 = vmax.f32 %v669, -20.0
    %v674 = vmin.f32 %v673, 2.0
    %v675 = vmul.f32 %v674, 1.442695
    %v676 = vpow.pop %v675
    %677 = vst [vmem:[#allocation11 + $0x8] sm:$0xff] %v676
    // Predicated region
    $region50: #{tpu_custom_call.1} parent=1 // pred_check
      _
    $region51: #{tpu_custom_call.1} parent=1 // pred_check_branch
      %679 = sbr.rel (0) target = $region53
    $region52: #{tpu_custom_call.1} parent=1 // pred_region
      %681 = vsyncadd [#allocation4], 0
      %s683 = sshll.u32 [#allocation11], 4
      %s684 = int_to_ptr.vmem [resolvable:$true] %s683
      %s685 = sshll.u32 %s7, 4
      %s686 = int_to_ptr.hbm [resolvable:$true] %s685
      %688 = dma.vmem_to_hbm [thread:$0]  %s684, 256, %s686, [#allocation4]
    $region53: #{tpu_custom_call.1} parent=1 // pred_fallthru
      _
    // Predicated region
    $region54: #{tpu_custom_call.1} parent=1 // pred_check
      _
    $region55: #{tpu_custom_call.1} parent=1 // pred_check_branch
      %690 = sbr.rel (0) target = $region57
    $region56: #{tpu_custom_call.1} parent=1 // pred_region
      %692 = dma.done [#allocation4], 256
    $region57: #{tpu_custom_call.1} parent=1 // pred_fallthru
      _
    %693 = vsyncpa [#allocation3], 1
    %694 = vsyncpa [#allocation6], 1
    %695 = vsyncpa [#allocation9], 1
    %696 = vsyncpa [#allocation4], 1

</llo_original>
